<compile_context>
chip_gen: v7x
topology: tpu7x:2x2x1
jax: 0.10.0
libtpu: 0.0.40
codegen_flags: <defaults>
</compile_context>

<pallas_src>
import jax
import jax.numpy as jnp
from jax.experimental import pallas as pl
from jax.experimental.pallas import tpu as pltpu


# ----------------------------- Pallas kernel --------------------------------

def _conv_relu_kernel(p_ref, w_ref, b_ref, o_ref):
    """Single block-diagonal matmul + bias + ReLU with a lane-dense bf16 store.

    p_ref: (TM, 4K) bf16 -- 4 consecutive im2col rows packed per row (free reshape)
    w_ref: (4K, 4N) bf16 -- block_diag(W, W, W, W)
    b_ref: (1, 4N)  f32  -- bias tiled 4x
    o_ref: (TM, 4N) bf16 -- column block [j*N:(j+1)*N] is the output of im2col row 4r+j
    """
    acc = jnp.dot(p_ref[...], w_ref[...], preferred_element_type=jnp.float32)
    o_ref[...] = jnp.maximum(acc + b_ref[...], 0.0).astype(o_ref.dtype)


def _conv_as_matmul(packed, w_bd, bias4, tm):
    """packed: (Mp, 4K) bf16, w_bd: (4K, 4N) bf16, bias4: (1, 4N) f32.

    Returns (Mp, 4N) bf16 where out[r, j*N + n] = relu(conv) for im2col row 4r+j,
    output channel n.
    """
    Mp, K4 = packed.shape
    N4 = w_bd.shape[1]
    assert Mp % tm == 0
    grid = Mp // tm

    flops = 2 * Mp * K4 * N4
    bytes_accessed = (packed.size * packed.dtype.itemsize
                      + w_bd.size * w_bd.dtype.itemsize
                      + bias4.size * bias4.dtype.itemsize
                      + Mp * N4 * 2)
    # double-buffered streamed input + output blocks, resident weight/bias, headroom
    vmem_need = (2 * (tm * K4 + tm * N4) * 2
                 + 2 * (K4 * N4 * 2 + N4 * 4) + (2 << 20))
    vmem_limit = int(min(max(vmem_need, 16 << 20), 96 << 20))

    return pl.pallas_call(
        _conv_relu_kernel,
        out_shape=jax.ShapeDtypeStruct((Mp, N4), jnp.bfloat16),
        grid_spec=pltpu.PrefetchScalarGridSpec(
            num_scalar_prefetch=0,
            grid=(grid,),
            in_specs=[
                pl.BlockSpec((tm, K4), lambda i: (i, 0)),
                # weight / bias: loop-invariant (same block every step).
                # TODO(synk): pipeline_mode=pl.Buffered(1) once real CSN-sized
                # weights make the second (wasted) buffer a VMEM concern.
                pl.BlockSpec((K4, N4), lambda i: (0, 0)),
                pl.BlockSpec((1, N4), lambda i: (0, 0)),
            ],
            out_specs=pl.BlockSpec((tm, N4), lambda i: (i, 0)),
        ),
        compiler_params=pltpu.CompilerParams(
            dimension_semantics=("parallel",),
            vmem_limit_bytes=vmem_limit),
        cost_estimate=pl.CostEstimate(
            flops=flops, transcendentals=0, bytes_accessed=int(bytes_accessed)),
    )(packed, w_bd, bias4)


# ------------------------------ Backbone ------------------------------------

class BackbonePallas:
    """Synthetic stand-in for Backbone (return_interm_layers=False -> {'0': layer4})."""

    def __init__(self, c_in=4, c_out=32, patch=4, key=jax.random.PRNGKey(0)):
        # TODO(synk): the full CSN-50/152 body (build_CSN) is not reproducible from
        # the given source; a single strided patch-embed conv + ReLU stands in.
        self.patch = patch
        self.c_in = c_in
        self.c_out = c_out
        k_w, k_b = jax.random.split(key)
        K = patch * patch * c_in
        # bf16 weights (halve HBM traffic, native MXU dtype); f32 bias / accumulate.
        self.weight = (jax.random.normal(k_w, (K, c_out), jnp.float32)
                       / jnp.sqrt(jnp.float32(K))).astype(jnp.bfloat16)
        self.bias = 0.01 * jax.random.normal(k_b, (c_out,), jnp.float32)
        # Block-diagonal weight (4K, 4N): lets the kernel run ONE lane-dense
        # (TM, 256)@(256, 128) MXU matmul instead of 4 underfilled (TM,64)@(64,32).
        w_bd = jnp.zeros((4 * K, 4 * c_out), jnp.bfloat16)
        for j in range(4):
            w_bd = w_bd.at[j * K:(j + 1) * K, j * c_out:(j + 1) * c_out].set(self.weight)
        self.w_bd = w_bd
        self.bias4 = jnp.tile(self.bias, 4).reshape(1, 4 * c_out)

    @staticmethod
    def _choose_tm(M, target=2048):
        """Packed rows per grid step.

        Prefer a divisor of M (no pad copy), a multiple of 16 (dense bf16 store
        tiles), ~2048 packed rows (~8192 patch rows, ~1.5 MiB working set), and an
        even step count when M is large (v7x megacore split). Returns (tm, Mp)."""
        if M <= target:
            return M, M                       # single full-extent block (always legal)
        best = None
        for tm in range(target, 15, -16):
            if M % tm == 0:
                if (M // tm) % 2 == 0:
                    return tm, M              # even split across the two TensorCores
                if best is None:
                    best = tm
        if best is not None:
            return best, M
        # TODO(synk): ragged-tail handling instead of a pad copy when M has no
        # divisor that is a multiple of 16 below the target.
        return target, pl.cdiv(M, target) * target

    def __call__(self, tensors, mask):
        """tensors: (bs, c, t, H, W) float32;  mask: (bs, H, W) bool."""
        bs, c, t, H, W = tensors.shape
        p = self.patch
        assert c == self.c_in and H % p == 0 and W % p == 0
        h, w = H // p, W // p
        hw = h * w
        K = p * p * c
        N = self.c_out
        TB = t * bs                                   # frames after time->batch fold
        M_total = TB * hw                             # im2col (patch) rows

        # ---- im2col fused into ONE transpose (bf16 cast fuses into the same copy).
        # Row order (t, bs, h, w) so the time->batch fold
        # (x.permute(2,0,1,3,4).reshape(t*bs, ...)) needs no extra data movement.
        # TODO(synk): for large inputs, read the native (bs,c,t,H,W) f32 tensor
        # directly in the kernel and relayout in VMEM to skip this patches buffer.
        x = tensors.astype(jnp.bfloat16)
        x = x.reshape(bs, c, t, h, p, w, p)
        x = jnp.transpose(x, (2, 0, 3, 5, 4, 6, 1))    # (t, bs, h, w, p, p, c) - one copy
        patches = x.reshape(M_total, K)                # free reshape

        if M_total % 4:
            # TODO(synk): ragged tail instead of a pad copy when t*bs*h*w % 4 != 0.
            patches = jnp.pad(patches, ((0, 4 - M_total % 4), (0, 0)))
        M = patches.shape[0] // 4
        packed = patches.reshape(M, 4 * K)             # free: 4 rows -> 1 packed row

        tm, Mp = self._choose_tm(M)
        if Mp != M:
            # Padded rows compute relu(bias) != 0 -- safe only because of the
            # [:M_total] slice below (never feed the padded tail downstream).
            packed = jnp.pad(packed, ((0, Mp - M), (0, 0)))

        # ---- hot path: conv-as-matmul in Pallas (single lane-dense MXU matmul)
        o = _conv_as_matmul(packed, self.w_bd, self.bias4, tm)   # (Mp, 4N) bf16

        # ---- lane-unpack is a FREE reshape; ONE XLA transpose does the NCHW fold
        # (and runs on half-width bf16 data).
        # TODO(synk): at real CSN feature sizes (hw >= 128), emit (frames, N, hw)
        # directly from the kernel epilogue and drop this transpose pass entirely.
        y = o.reshape(Mp * 4, N)
        if Mp * 4 != M_total:
            y = y[:M_total]
        y = y.reshape(TB, h, w, N)
        x_out = jnp.transpose(y, (0, 3, 1, 2))          # (t*bs, c_out, h, w) bf16

        # ---- mask: F.interpolate(m[None].float(), size=(h, w)) default 'nearest';
        # integer-factor downsample -> strided slice (floor(i*H/h) = i*p).
        mask_ds = mask[:, ::p, ::p]                                   # (bs, h, w)
        # unsqueeze(1).repeat(1, t, 1, 1) -> (bs, t, h, w)
        mask_rep = jnp.broadcast_to(mask_ds[:, None, :, :], (bs, t, h, w))
        # permute(1,0,2,3).reshape(t*bs, h, w)
        mask_out = jnp.transpose(mask_rep, (1, 0, 2, 3)).reshape(TB, h, w)

        return {"0": (x_out, mask_out)}


# ------------------------------ reference ------------------------------------

def _reference_forward(tensors, mask, weight_bf16, bias, patch, c_out):
    """Pure-JAX reference with the same bf16-in / f32-accumulate / bf16-out numerics."""
    bs, c, t, H, W = tensors.shape
    p = patch
    h, w = H // p, W // p
    x = jnp.transpose(tensors, (2, 0, 3, 4, 1)).reshape(t * bs, h, p, w, p, c)
    x = jnp.transpose(x, (0, 1, 3, 2, 4, 5)).reshape(t * bs * h * w, p * p * c)
    y = jnp.dot(x.astype(jnp.bfloat16), weight_bf16,
                preferred_element_type=jnp.float32) + bias
    y = jnp.maximum(y, 0.0).astype(jnp.bfloat16).reshape(t * bs, h, w, c_out)
    x_out = jnp.transpose(y, (0, 3, 1, 2))
    mask_ds = mask[:, ::p, ::p]
    mask_rep = jnp.broadcast_to(mask_ds[:, None, :, :], (bs, t, h, w))
    mask_out = jnp.transpose(mask_rep, (1, 0, 2, 3)).reshape(t * bs, h, w)
    return x_out, mask_out


# ------------------------------ driver ---------------------------------------

if __name__ == "__main__":
    key = jax.random.PRNGKey(0)
    k_x, k_m, k_p = jax.random.split(key, 3)

    bs, c, t, H, W = 2, 4, 8, 16, 16
    c_out, patch = 32, 4
    tensors = jax.random.normal(k_x, (bs, c, t, H, W), jnp.float32)
    # DETR-style padding mask: True where padded
    mask = jax.random.bernoulli(k_m, 0.25, (bs, H, W))

    backbone = BackbonePallas(c_in=c, c_out=c_out, patch=patch, key=k_p)
    fwd = jax.jit(lambda ten, m: backbone(ten, m))

    out = fwd(tensors, mask)
    x_out, mask_out = out["0"]
    jax.block_until_ready(x_out)
    jax.block_until_ready(mask_out)

    assert x_out.shape == (t * bs, c_out, H // patch, W // patch), x_out.shape
    assert x_out.dtype == jnp.bfloat16, x_out.dtype
    assert mask_out.shape == (t * bs, H // patch, W // patch), mask_out.shape
    assert mask_out.dtype == jnp.bool_

    # numerical check against a pure-JAX reference (same bf16/f32 numerics)
    x_ref, m_ref = _reference_forward(tensors, mask, backbone.weight,
                                      backbone.bias, patch, c_out)
    diff = jnp.max(jnp.abs(x_out.astype(jnp.float32) - x_ref.astype(jnp.float32)))
    assert jnp.allclose(x_out.astype(jnp.float32), x_ref.astype(jnp.float32),
                        rtol=2e-2, atol=2e-2), float(diff)
    assert bool(jnp.all(mask_out == m_ref))

    print("KERNEL_OK")
</pallas_src>

<mosaic_0001>
module attributes {stable_mosaic.version = 11 : i64} {
  func.func @_conv_relu_kernel(%arg0: i32, %arg1: memref<64x256xbf16, #tpu.memory_space<vmem>>, %arg2: memref<256x128xbf16, #tpu.memory_space<vmem>>, %arg3: memref<1x128xf32, #tpu.memory_space<vmem>>, %arg4: memref<64x128xbf16, #tpu.memory_space<vmem>>) attributes {dimension_semantics = [#tpu.dimension_semantics<parallel>], iteration_bounds = array<i64: 1>, scalar_prefetch = 0 : i64, scratch_operands = 0 : i64, tpu.core_type = #tpu.core_type<tc>, window_params = [{transform_indices = @transform_0, window_bounds = array<i64: 64, 256>}, {pipeline_mode = #tpu.pipeline_mode<synchronous>, transform_indices = @transform_1, window_bounds = array<i64: 256, 128>}, {pipeline_mode = #tpu.pipeline_mode<synchronous>, transform_indices = @transform_2, window_bounds = array<i64: 1, 128>}, {transform_indices = @transform_3, window_bounds = array<i64: 64, 128>}]} {
    %c0 = arith.constant 0 : index
    %c0_0 = arith.constant 0 : index
    %0 = vector.load %arg1[%c0, %c0_0] : memref<64x256xbf16, #tpu.memory_space<vmem>>, vector<64x256xbf16>
    %c0_1 = arith.constant 0 : index
    %c0_2 = arith.constant 0 : index
    %1 = vector.load %arg2[%c0_1, %c0_2] : memref<256x128xbf16, #tpu.memory_space<vmem>>, vector<256x128xbf16>
    %cst = arith.constant dense<0.000000e+00> : vector<64x128xf32>
    %2 = tpu.matmul %0, %1, %cst {dimension_numbers = #tpu.dot_dimension_numbers<[1], [0], [0], [1], [0, 0, 1, 1], [], []>} : vector<64x256xbf16>, vector<256x128xbf16>, vector<64x128xf32> -> vector<64x128xf32>
    %c0_3 = arith.constant 0 : index
    %c0_4 = arith.constant 0 : index
    %3 = vector.load %arg3[%c0_3, %c0_4] : memref<1x128xf32, #tpu.memory_space<vmem>>, vector<1x128xf32>
    %4 = vector.broadcast %3 : vector<1x128xf32> to vector<64x128xf32>
    %5 = arith.addf %2, %4 : vector<64x128xf32>
    %cst_5 = arith.constant 0.000000e+00 : f32
    %6 = vector.broadcast %cst_5 : f32 to vector<64x128xf32>
    %7 = arith.maximumf %5, %6 : vector<64x128xf32>
    %8 = arith.truncf %7 : vector<64x128xf32> to vector<64x128xbf16>
    %c0_6 = arith.constant 0 : index
    %c0_7 = arith.constant 0 : index
    %9 = vector.load %arg4[%c0_6, %c0_7] : memref<64x128xbf16, #tpu.memory_space<vmem>>, vector<64x128xbf16>
    tpu.vector_store %arg4[%c0_6, %c0_7], %8 {strides = array<i32>} : memref<64x128xbf16, #tpu.memory_space<vmem>>, vector<64x128xbf16>,
    return
  }
  func.func @transform_0(%arg0: i32) -> (i32, i32) {
    %c0_i32 = arith.constant 0 : i32
    %c0_i32_0 = arith.constant 0 : i32
    return %arg0, %c0_i32 : i32, i32
  }
  func.func @transform_1(%arg0: i32) -> (i32, i32) {
    %c0_i32 = arith.constant 0 : i32
    %c0_i32_0 = arith.constant 0 : i32
    %c0_i32_1 = arith.constant 0 : i32
    return %c0_i32, %c0_i32_0 : i32, i32
  }
  func.func @transform_2(%arg0: i32) -> (i32, i32) {
    %c0_i32 = arith.constant 0 : i32
    %c0_i32_0 = arith.constant 0 : i32
    %c0_i32_1 = arith.constant 0 : i32
    return %c0_i32, %c0_i32_0 : i32, i32
  }
  func.func @transform_3(%arg0: i32) -> (i32, i32) {
    %c0_i32 = arith.constant 0 : i32
    %c0_i32_0 = arith.constant 0 : i32
    return %arg0, %c0_i32 : i32, i32
  }
}

</mosaic_0001>

<llo_original>
// kernel: _lambda_.1
$region0: #{_lambda_.1}
  #allocation0 [shape = 'u32[]', space=smem, size = 0x4, offset = 0x4, fixed_abs, tag = 'smem constant byte address 0x4 - core index']
  #allocation1 [shape = 'u32[144,128]{1,0:T(1,128)}', space=vmem, size = 0x12000, scoped, tag = 'internal scratch']
  %s0 = inlined_call_operand.vmem [shape: bf16[64,256], index: 0, kind: input, shape index: {}]
  %s1 = inlined_call_operand.vmem [shape: bf16[256,128], index: 1, kind: input, shape index: {}]
  %s2 = inlined_call_operand.vmem [shape: f32[1,128], index: 2, kind: input, shape index: {}]
  %s3 = inlined_call_operand.vmem [shape: bf16[64,128], index: 3, kind: output, shape index: {}]
  %s4 = sld [smem:[#allocation0]]
  $region22: #{_lambda_.1} parent=0
    _
  %s6 = ssub.s32 1, %s4
  %s7 = scalar_select 0, %s6, %s4
  // Predicated region
  $region2: #{_lambda_.1} parent=0 // pred_check
    _
  $region3: #{_lambda_.1} parent=0 // pred_check_branch
    %9 = sbr.rel (0) target = $region5
  $region4: #{_lambda_.1} parent=0 // pred_region
    _
  $region5: #{_lambda_.1} parent=0 // pred_fallthru
    _
  // Predicated region
  $region6: #{_lambda_.1} parent=0 // pred_check
    _
  $region7: #{_lambda_.1} parent=0 // pred_check_branch
    %11 = sbr.rel (0) target = $region9
  $region8: #{_lambda_.1} parent=0 // pred_region
    _
  $region9: #{_lambda_.1} parent=0 // pred_fallthru
    _
  // Predicated region
  $region10: #{_lambda_.1} parent=0 // pred_check
    _
  $region11: #{_lambda_.1} parent=0 // pred_check_branch
    %13 = sbr.rel (0) target = $region13
  $region12: #{_lambda_.1} parent=0 // pred_region
    _
  $region13: #{_lambda_.1} parent=0 // pred_fallthru
    _
  %v15 = vld [vmem:[%s0] sm:$0xff]
  %v16 = vld [vmem:[%s0 + $0x8] sm:$0xff]
  %v17 = vld [vmem:[%s0 + $0x10] sm:$0xff]
  %v18 = vld [vmem:[%s0 + $0x18] sm:$0xff]
  %v19 = vld [vmem:[%s0 + $0x20] sm:$0xff]
  %v20 = vld [vmem:[%s0 + $0x28] sm:$0xff]
  %v21 = vld [vmem:[%s0 + $0x30] sm:$0xff]
  %v22 = vld [vmem:[%s0 + $0x38] sm:$0xff]
  %v23 = vld [vmem:[%s1] sm:$0xf]
  %v24 = vld [vmem:[%s1 + $0x4] sm:$0xf]
  %v25 = vld [vmem:[%s1 + $0x8] sm:$0xf]
  %v26 = vld [vmem:[%s1 + $0xc] sm:$0xf]
  %v27 = vld [vmem:[%s1 + $0x10] sm:$0xf]
  %v28 = vld [vmem:[%s1 + $0x14] sm:$0xf]
  %v29 = vld [vmem:[%s1 + $0x18] sm:$0xf]
  %v30 = vld [vmem:[%s1 + $0x1c] sm:$0xf]
  %v31 = vld [vmem:[%s1 + $0x20] sm:$0xf]
  %v32 = vld [vmem:[%s1 + $0x24] sm:$0xf]
  %v33 = vld [vmem:[%s1 + $0x28] sm:$0xf]
  %v34 = vld [vmem:[%s1 + $0x2c] sm:$0xf]
  %v35 = vld [vmem:[%s1 + $0x30] sm:$0xf]
  %v36 = vld [vmem:[%s1 + $0x34] sm:$0xf]
  %v37 = vld [vmem:[%s1 + $0x38] sm:$0xf]
  %v38 = vld [vmem:[%s1 + $0x3c] sm:$0xf]
  %v39 = vld [vmem:[%s1 + $0x40] sm:$0xf]
  %v40 = vld [vmem:[%s1 + $0x44] sm:$0xf]
  %v41 = vld [vmem:[%s1 + $0x48] sm:$0xf]
  %v42 = vld [vmem:[%s1 + $0x4c] sm:$0xf]
  %v43 = vld [vmem:[%s1 + $0x50] sm:$0xf]
  %v44 = vld [vmem:[%s1 + $0x54] sm:$0xf]
  %v45 = vld [vmem:[%s1 + $0x58] sm:$0xf]
  %v46 = vld [vmem:[%s1 + $0x5c] sm:$0xf]
  %v47 = vld [vmem:[%s1 + $0x60] sm:$0xf]
  %v48 = vld [vmem:[%s1 + $0x64] sm:$0xf]
  %v49 = vld [vmem:[%s1 + $0x68] sm:$0xf]
  %v50 = vld [vmem:[%s1 + $0x6c] sm:$0xf]
  %v51 = vld [vmem:[%s1 + $0x70] sm:$0xf]
  %v52 = vld [vmem:[%s1 + $0x74] sm:$0xf]
  %v53 = vld [vmem:[%s1 + $0x78] sm:$0xf]
  %v54 = vld [vmem:[%s1 + $0x7c] sm:$0xf]
  %v55 = vld [vmem:[%s2] sm:$0x1]
  %v57 = vlaneseq
  %v58 = vshrl.u32 %v57, 7
  %v59 = vsub.s32 0, %v58
  %v60 = vrot.slane %v55, %v59
  %v70 = vunpack.c.l.b16 %v15
  %v71 = vunpack.c.h.b16 %v15
  %v72 = vunpack.c.l.b16 %v16
  %v73 = vunpack.c.h.b16 %v16
  %v74 = vunpack.c.l.b16 %v17
  %v75 = vunpack.c.h.b16 %v17
  %v76 = vunpack.c.l.b16 %v18
  %v77 = vunpack.c.h.b16 %v18
  %v78 = vunpack.c.l.b16 %v19
  %v79 = vunpack.c.h.b16 %v19
  %v80 = vunpack.c.l.b16 %v20
  %v81 = vunpack.c.h.b16 %v20
  %v82 = vunpack.c.l.b16 %v21
  %v83 = vunpack.c.h.b16 %v21
  %v84 = vunpack.c.l.b16 %v22
  %v85 = vunpack.c.h.b16 %v22
  %v86 = vpack.c.b16 %v72, %v70
  %v87 = vpack.c.b16 %v73, %v71
  %v88 = vpack.c.b16 %v76, %v74
  %v89 = vpack.c.b16 %v77, %v75
  %v90 = vpack.c.b16 %v80, %v78
  %v91 = vpack.c.b16 %v81, %v79
  %v92 = vpack.c.b16 %v84, %v82
  %v93 = vpack.c.b16 %v85, %v83
  %v134 = vunpack.c.l.b16 %v23
  %v135 = vunpack.c.l.b16 %v24
  %v136 = vunpack.c.l.b16 %v25
  %v137 = vunpack.c.l.b16 %v26
  %v138 = vunpack.c.l.b16 %v27
  %v139 = vunpack.c.l.b16 %v28
  %v140 = vunpack.c.l.b16 %v29
  %v141 = vunpack.c.l.b16 %v30
  %v142 = vunpack.c.l.b16 %v31
  %v143 = vunpack.c.l.b16 %v32
  %v144 = vunpack.c.l.b16 %v33
  %v145 = vunpack.c.l.b16 %v34
  %v146 = vunpack.c.l.b16 %v35
  %v147 = vunpack.c.l.b16 %v36
  %v148 = vunpack.c.l.b16 %v37
  %v149 = vunpack.c.l.b16 %v38
  %v150 = vunpack.c.l.b16 %v39
  %v151 = vunpack.c.l.b16 %v40
  %v152 = vunpack.c.l.b16 %v41
  %v153 = vunpack.c.l.b16 %v42
  %v154 = vunpack.c.l.b16 %v43
  %v155 = vunpack.c.l.b16 %v44
  %v156 = vunpack.c.l.b16 %v45
  %v157 = vunpack.c.l.b16 %v46
  %v158 = vunpack.c.l.b16 %v47
  %v159 = vunpack.c.l.b16 %v48
  %v160 = vunpack.c.l.b16 %v49
  %v161 = vunpack.c.l.b16 %v50
  %v162 = vunpack.c.l.b16 %v51
  %v163 = vunpack.c.l.b16 %v52
  %v164 = vunpack.c.l.b16 %v53
  %v165 = vunpack.c.l.b16 %v54
  %v166 = vpack.c.b16 %v135, %v134
  %v167 = vpack.c.b16 %v137, %v136
  %v168 = vpack.c.b16 %v139, %v138
  %v169 = vpack.c.b16 %v141, %v140
  %v170 = vpack.c.b16 %v143, %v142
  %v171 = vpack.c.b16 %v145, %v144
  %v172 = vpack.c.b16 %v147, %v146
  %v173 = vpack.c.b16 %v149, %v148
  %v174 = vpack.c.b16 %v151, %v150
  %v175 = vpack.c.b16 %v153, %v152
  %v176 = vpack.c.b16 %v155, %v154
  %v177 = vpack.c.b16 %v157, %v156
  %v178 = vpack.c.b16 %v159, %v158
  %v179 = vpack.c.b16 %v161, %v160
  %v180 = vpack.c.b16 %v163, %v162
  %v181 = vpack.c.b16 %v165, %v164
  %198 = vmatprep.subr.bf16.mxu0 0
  %199 = vmatpush1.bf16.msra.mxu0 %v166
  %200 = vmatprep.subr.bf16.mxu0 0
  %201 = vmatpush1.bf16.msra.mxu0 %v167
  %202 = vmatprep.subr.bf16.mxu0 0
  %203 = vmatpush1.bf16.msra.mxu0 %v168
  %204 = vmatprep.subr.bf16.mxu0 0
  %205 = vmatpush1.bf16.msra.mxu0 %v169
  %206 = vmatprep.subr.bf16.mxu0 0
  %207 = vmatpush1.bf16.msra.mxu0 %v170
  %208 = vmatprep.subr.bf16.mxu0 0
  %209 = vmatpush1.bf16.msra.mxu0 %v171
  %210 = vmatprep.subr.bf16.mxu0 0
  %211 = vmatpush1.bf16.msra.mxu0 %v172
  %212 = vmatprep.subr.bf16.mxu0 0
  %213 = vmatpush1.bf16.msra.mxu0 %v173
  %214 = vmatprep.subr.bf16.mxu0 0
  %215 = vmatpush1.bf16.msra.mxu0 %v174
  %216 = vmatprep.subr.bf16.mxu0 0
  %217 = vmatpush1.bf16.msra.mxu0 %v175
  %218 = vmatprep.subr.bf16.mxu0 0
  %219 = vmatpush1.bf16.msra.mxu0 %v176
  %220 = vmatprep.subr.bf16.mxu0 0
  %221 = vmatpush1.bf16.msra.mxu0 %v177
  %222 = vmatprep.subr.bf16.mxu0 0
  %223 = vmatpush1.bf16.msra.mxu0 %v178
  %224 = vmatprep.subr.bf16.mxu0 0
  %225 = vmatpush1.bf16.msra.mxu0 %v179
  %226 = vmatprep.subr.bf16.mxu0 0
  %227 = vmatpush1.bf16.msra.mxu0 %v180
  %228 = vmatprep.subr.bf16.mxu0 0
  %229 = vmatpush1.bf16.msra.mxu0 %v181
  %230 = vmatprep.mubr.bf16.mxu0 %v87
  %231 = vmatmul.mubr.bf16.gmra.mrb[0].mxu0 %v86
  %v232 = vpop.f32.mrb[0].mxu0
  %v233 = vadd.f32 %v60, %v232
  %v234 = vpop.f32.mrb[0].mxu0
  %v235 = vpop.f32.mrb[0].mxu0
  %v236 = vadd.f32 %v60, %v235
  %v237 = vpop.f32.mrb[0].mxu0
  %238 = vmatprep.mubr.bf16.mxu0 %v89
  %239 = vmatmul.mubr.bf16.gmra.mrb[0].mxu0 %v88
  %v240 = vpop.f32.mrb[0].mxu0
  %v241 = vadd.f32 %v60, %v240
  %v242 = vpop.f32.mrb[0].mxu0
  %v243 = vpop.f32.mrb[0].mxu0
  %v244 = vadd.f32 %v60, %v243
  %v245 = vpop.f32.mrb[0].mxu0
  %246 = vmatprep.mubr.bf16.mxu0 %v91
  %247 = vmatmul.mubr.bf16.gmra.mrb[0].mxu0 %v90
  %v248 = vpop.f32.mrb[0].mxu0
  %v249 = vadd.f32 %v60, %v248
  %v250 = vpop.f32.mrb[0].mxu0
  %v251 = vpop.f32.mrb[0].mxu0
  %v252 = vadd.f32 %v60, %v251
  %v253 = vpop.f32.mrb[0].mxu0
  %254 = vmatprep.mubr.bf16.mxu0 %v93
  %255 = vmatmul.mubr.bf16.gmra.mrb[0].mxu0 %v92
  %v256 = vpop.f32.mrb[0].mxu0
  %v257 = vadd.f32 %v60, %v256
  %v258 = vpop.f32.mrb[0].mxu0
  %v259 = vpop.f32.mrb[0].mxu0
  %v260 = vadd.f32 %v60, %v259
  %v261 = vpop.f32.mrb[0].mxu0
  %262 = vdwg.mxu0
  %v263 = vmax.f32 %v233, 0.0
  %v264 = vmax.f32 %v236, 0.0
  %v265 = vmax.f32 %v241, 0.0
  %v266 = vmax.f32 %v244, 0.0
  %v267 = vmax.f32 %v249, 0.0
  %v268 = vmax.f32 %v252, 0.0
  %v269 = vmax.f32 %v257, 0.0
  %v270 = vmax.f32 %v260, 0.0
  %v271 = vpack.c.bf16 %v264, %v263
  %v272 = vpack.c.bf16 %v266, %v265
  %v273 = vpack.c.bf16 %v268, %v267
  %v274 = vpack.c.bf16 %v270, %v269
  %v279 = vunpack.c.l.b16 %v271
  %v280 = vunpack.c.h.b16 %v271
  %v281 = vunpack.c.l.b16 %v272
  %v282 = vunpack.c.h.b16 %v272
  %v283 = vunpack.c.l.b16 %v273
  %v284 = vunpack.c.h.b16 %v273
  %v285 = vunpack.c.l.b16 %v274
  %v286 = vunpack.c.h.b16 %v274
  %v287 = vpack.c.b16 %v279, %v279
  %v288 = vpack.c.b16 %v280, %v280
  %v289 = vpack.c.b16 %v281, %v281
  %v290 = vpack.c.b16 %v282, %v282
  %v291 = vpack.c.b16 %v283, %v283
  %v292 = vpack.c.b16 %v284, %v284
  %v293 = vpack.c.b16 %v285, %v285
  %v294 = vpack.c.b16 %v286, %v286
  %303 = vst [vmem:[%s3] sm:$0xf] %v287
  %304 = vst [vmem:[%s3 + $0x4] sm:$0xf] %v288
  %305 = vst [vmem:[%s3 + $0x8] sm:$0xf] %v289
  %306 = vst [vmem:[%s3 + $0xc] sm:$0xf] %v290
  %307 = vst [vmem:[%s3 + $0x10] sm:$0xf] %v291
  %308 = vst [vmem:[%s3 + $0x14] sm:$0xf] %v292
  %309 = vst [vmem:[%s3 + $0x18] sm:$0xf] %v293
  %310 = vst [vmem:[%s3 + $0x1c] sm:$0xf] %v294
  // Predicated region
  $region14: #{_lambda_.1} parent=0 // pred_check
    _
  $region15: #{_lambda_.1} parent=0 // pred_check_branch
    %312 = sbr.rel (0) target = $region17
  $region16: #{_lambda_.1} parent=0 // pred_region
    _
  $region17: #{_lambda_.1} parent=0 // pred_fallthru
    _
  // Predicated region
  $region18: #{_lambda_.1} parent=0 // pred_check
    _
  $region19: #{_lambda_.1} parent=0 // pred_check_branch
    %314 = sbr.rel (0) target = $region21
  $region20: #{_lambda_.1} parent=0 // pred_region
    _
  $region21: #{_lambda_.1} parent=0 // pred_fallthru
    _

</llo_original>
